<compile_context>
chip_gen: v5e
topology: v5e:2x2
jax: 0.10.0
libtpu: 0.0.40
codegen_flags: <defaults>
</compile_context>

<pallas_src>
import functools

import jax
import jax.numpy as jnp
from jax import lax
from jax.experimental import pallas as pl
from jax.experimental.pallas import tpu as pltpu


LANE = 128
SUBLANE = 8


def _round_up(x, m):
    return (x + m - 1) // m * m


def _permute_gate_rows(w):
    """Reorder PyTorch LSTM gate blocks [i, f, g, o] -> [i, f, o, g] along axis 0."""
    H = w.shape[0] // 4
    return jnp.concatenate([w[:2 * H], w[3 * H:], w[2 * H:3 * H]], axis=0)


# ----------------------------------------------------------------------------
# Kernel: TS LSTM cell steps per grid iteration + one deferred linear head.
# Gate column order (after prep-time permutation): [i, f, o, g].
# ----------------------------------------------------------------------------
def lstm_decoder_kernel(xp_ref, h0_ref, c0_ref, w_hh_ref, w_lin_ref, b_lin_ref,
                        out_ref, hn_ref, cn_ref,
                        h_scr, c_scr, hs_scr, *, t_total):
    blk = pl.program_id(0)
    TS, B, _ = xp_ref.shape
    H = h0_ref.shape[-1]
    IP = w_lin_ref.shape[-1]
    needs_mask = (t_total % TS) != 0   # padded trailing steps only in last block

    # Initialize the VMEM-resident carry from the encoder hidden state.
    @pl.when(blk == 0)
    def _():
        h_scr[...] = h0_ref[...]
        c_scr[...] = c0_ref[...]

    def step(s, carry):
        h, c = carry
        # gates = streamed (x @ W_ih^T + b) fp32 + h @ W_hh^T (bf16 MXU, fp32 acc).
        gates = xp_ref[s] + jnp.dot(h.astype(w_hh_ref.dtype), w_hh_ref[...],
                                    preferred_element_type=jnp.float32)
        # One sigmoid pass over the tile; tanh only on the last H (g) lanes.
        sig = jax.nn.sigmoid(gates)
        i_g = sig[:, 0 * H:1 * H]
        f_g = sig[:, 1 * H:2 * H]
        o_g = sig[:, 2 * H:3 * H]
        g_g = jnp.tanh(gates[:, 3 * H:4 * H])
        c_new = f_g * c + i_g * g_g
        h_new = o_g * jnp.tanh(c_new)
        hs_scr[s] = h_new                      # stash for the deferred head
        if needs_mask:                          # freeze carry on padded steps
            valid = (blk * TS + s) < t_total
            h_new = jnp.where(valid, h_new, h)
            c_new = jnp.where(valid, c_new, c)
        return (h_new, c_new)

    h_fin, c_fin = lax.fori_loop(0, TS, step, (h_scr[...], c_scr[...]),
                                 unroll=True)
    h_scr[...] = h_fin
    c_scr[...] = c_fin

    # Deferred linear head: one (TS*B, H) @ (H, IP) matmul + one lane-dense store.
    hs = hs_scr[...].reshape(TS * B, H)
    out = (jnp.dot(hs.astype(w_lin_ref.dtype), w_lin_ref[...],
                   preferred_element_type=jnp.float32) + b_lin_ref[...])
    out_ref[...] = out.reshape(TS, B, IP).astype(out_ref.dtype)

    # Final hidden state written back only once, on the last block.
    @pl.when(blk == pl.num_programs(0) - 1)
    def _():
        hn_ref[...] = h_fin.astype(hn_ref.dtype)
        cn_ref[...] = c_fin.astype(cn_ref.dtype)


# ----------------------------------------------------------------------------
# One-time parameter preparation (hoisted out of the per-call forward path).
# ----------------------------------------------------------------------------
def prepare_decoder_params(params, matmul_dtype=jnp.bfloat16):
    I = params["w_ih"].shape[1]
    H = params["w_hh"].shape[1]
    IP = _round_up(I, LANE)

    w_ih = _permute_gate_rows(params["w_ih"])                     # (4H, I)
    w_hh = _permute_gate_rows(params["w_hh"])                     # (4H, H)
    b = _permute_gate_rows(params["b_ih"] + params["b_hh"])       # (4H,)

    w_lin_p = jnp.zeros((H, IP), jnp.float32).at[:, :I].set(params["w_lin"].T)
    b_lin_p = jnp.zeros((1, IP), jnp.float32).at[:, :I].set(params["b_lin"])

    return {
        "w_ih_t": w_ih.T.astype(matmul_dtype),     # (I, 4H)  used outside the kernel
        "w_hh_t": w_hh.T.astype(matmul_dtype),     # (H, 4H)  VMEM-resident
        "b": b.reshape(1, 4 * H).astype(jnp.float32),
        "w_lin_p": w_lin_p.astype(matmul_dtype),   # (H, IP)  VMEM-resident
        "b_lin_p": b_lin_p,                        # (1, IP)  fp32
    }


# ----------------------------------------------------------------------------
# Fused multi-step decode: x_steps is (T, B, I), h0/c0 are (B, H).
# ----------------------------------------------------------------------------
@functools.partial(jax.jit, static_argnames=("ts",))
def lstm_decode(x_steps, h0, c0, prepped, ts=16):
    T, B, I = x_steps.shape
    H = h0.shape[-1]
    IP = prepped["w_lin_p"].shape[-1]
    mm_dtype = prepped["w_hh_t"].dtype

    TS = max(1, min(ts, T))
    n_blk = -(-T // TS)
    T_pad = n_blk * TS
    B_pad = _round_up(B, SUBLANE)

    # Hoisted input projection (+ combined LSTM bias): one MXU-shaped matmul for
    # the whole sequence, outside the recurrence. fp32 accumulation.
    xp = (jnp.dot(x_steps.reshape(T * B, I).astype(mm_dtype), prepped["w_ih_t"],
                  preferred_element_type=jnp.float32)
          + prepped["b"]).reshape(T, B, 4 * H)

    # Pad time to a multiple of TS and batch to a full sublane tile.
    xp = jnp.pad(xp, ((0, T_pad - T), (0, B_pad - B), (0, 0)))
    h0p = jnp.pad(h0.astype(jnp.float32), ((0, B_pad - B), (0, 0)))
    c0p = jnp.pad(c0.astype(jnp.float32), ((0, B_pad - B), (0, 0)))

    resident = lambda shape: pl.BlockSpec(shape, lambda b: (0, 0))

    grid_spec = pltpu.PrefetchScalarGridSpec(
        num_scalar_prefetch=0,
        grid=(n_blk,),
        in_specs=[
            pl.BlockSpec((TS, B_pad, 4 * H), lambda b: (b, 0, 0)),  # streamed preacts
            resident((B_pad, H)),          # h0
            resident((B_pad, H)),          # c0
            resident((H, 4 * H)),          # W_hh^T (bf16)
            resident((H, IP)),             # W_lin^T (bf16, lane-padded)
            resident((1, IP)),             # b_lin (fp32, lane-padded)
        ],
        out_specs=(
            pl.BlockSpec((TS, B_pad, IP), lambda b: (b, 0, 0)),     # per-step output
            resident((B_pad, H)),          # h_n
            resident((B_pad, H)),          # c_n
        ),
        scratch_shapes=[
            pltpu.VMEM((B_pad, H), jnp.float32),        # h carry (fp32)
            pltpu.VMEM((B_pad, H), jnp.float32),        # c carry (fp32)
            pltpu.VMEM((TS, B_pad, H), jnp.float32),    # per-step h for deferred head
        ],
    )

    out_p, h_n, c_n = pl.pallas_call(
        functools.partial(lstm_decoder_kernel, t_total=T),
        out_shape=(
            jax.ShapeDtypeStruct((T_pad, B_pad, IP), jnp.float32),
            jax.ShapeDtypeStruct((B_pad, H), jnp.float32),
            jax.ShapeDtypeStruct((B_pad, H), jnp.float32),
        ),
        grid_spec=grid_spec,
        compiler_params=pltpu.CompilerParams(
            dimension_semantics=("arbitrary",)),
    )(xp, h0p, c0p, prepped["w_hh_t"], prepped["w_lin_p"], prepped["b_lin_p"])

    return out_p[:T, :B, :I], (h_n[:B], c_n[:B])


# ----------------------------------------------------------------------------
# Module-faithful forward: one decode step (seq_len = 1), PyTorch-shaped I/O.
#   x_input: (B, input_size); encoder_hidden_states: ((1, B, H), (1, B, H)).
# Returns (output (B, input_size), (h_n (1,B,H), c_n (1,B,H))).
# For step-by-step serving prefer lstm_decode with T > 1 (fused launch).
# ----------------------------------------------------------------------------
@jax.jit
def lstm_decoder_forward(x_input, encoder_hidden_states, prepped):
    h0, c0 = encoder_hidden_states
    out, (h_n, c_n) = lstm_decode(x_input[None], h0[0], c0[0], prepped)  # T = 1
    return out[0], (h_n[None], c_n[None])


# ----------------------------------------------------------------------------
# Pure-JAX reference reproducing the PyTorch semantics (sanity check only).
# ----------------------------------------------------------------------------
def _reference_step(x, h, c, params):
    H = h.shape[-1]
    gates = (x @ params["w_ih"].T + params["b_ih"]
             + h @ params["w_hh"].T + params["b_hh"])
    i_g = jax.nn.sigmoid(gates[:, 0 * H:1 * H])
    f_g = jax.nn.sigmoid(gates[:, 1 * H:2 * H])
    g_g = jnp.tanh(gates[:, 2 * H:3 * H])
    o_g = jax.nn.sigmoid(gates[:, 3 * H:4 * H])
    c1 = f_g * c + i_g * g_g
    h1 = o_g * jnp.tanh(c1)
    out = h1 @ params["w_lin"].T + params["b_lin"]
    return out, h1, c1


if __name__ == "__main__":
    B = 2            # batch
    INPUT_SIZE = 16  # LSTM input_size == linear output features
    HIDDEN = 32      # LSTM hidden_size
    T = 8            # decode steps for the fused multi-step demo

    key = jax.random.PRNGKey(0)
    keys = jax.random.split(key, 10)
    scale = 0.1

    params = {
        "w_ih": scale * jax.random.normal(keys[0], (4 * HIDDEN, INPUT_SIZE), jnp.float32),
        "w_hh": scale * jax.random.normal(keys[1], (4 * HIDDEN, HIDDEN), jnp.float32),
        "b_ih": scale * jax.random.normal(keys[2], (4 * HIDDEN,), jnp.float32),
        "b_hh": scale * jax.random.normal(keys[3], (4 * HIDDEN,), jnp.float32),
        "w_lin": scale * jax.random.normal(keys[4], (INPUT_SIZE, HIDDEN), jnp.float32),
        "b_lin": scale * jax.random.normal(keys[5], (INPUT_SIZE,), jnp.float32),
    }

    x_input = jax.random.normal(keys[6], (B, INPUT_SIZE), jnp.float32)
    h0 = jax.random.normal(keys[7], (1, B, HIDDEN), jnp.float32)
    c0 = jax.random.normal(keys[8], (1, B, HIDDEN), jnp.float32)
    x_seq = jax.random.normal(keys[9], (T, B, INPUT_SIZE), jnp.float32)

    # One-time parameter prep (transposes / bias sum / gate permutation / padding).
    prepped_f32 = prepare_decoder_params(params, matmul_dtype=jnp.float32)
    prepped_bf16 = prepare_decoder_params(params, matmul_dtype=jnp.bfloat16)

    # Reference trajectory.
    ref_outs = []
    rh, rc = h0[0], c0[0]
    for t in range(T):
        r_out, rh, rc = _reference_step(x_seq[t], rh, rc, params)
        ref_outs.append(r_out)
    ref_out1, ref_h1, ref_c1 = _reference_step(x_input, h0[0], c0[0], params)

    # --- 1) Module-faithful single-step forward (fp32 matmuls, strict check) ---
    out, (h_n, c_n) = lstm_decoder_forward(x_input, (h0, c0), prepped_f32)
    jax.block_until_ready((out, h_n, c_n))
    assert out.shape == (B, INPUT_SIZE) and out.dtype == jnp.float32
    assert h_n.shape == (1, B, HIDDEN) and c_n.shape == (1, B, HIDDEN)
    assert jnp.allclose(out, ref_out1, atol=1e-4, rtol=1e-4)
    assert jnp.allclose(h_n, ref_h1[None], atol=1e-4, rtol=1e-4)
    assert jnp.allclose(c_n, ref_c1[None], atol=1e-4, rtol=1e-4)

    # --- 2) Fused multi-step decode, fp32 matmuls (strict check) ---------------
    seq_out, (h_T, c_T) = lstm_decode(x_seq, h0[0], c0[0], prepped_f32)
    jax.block_until_ready((seq_out, h_T, c_T))
    assert seq_out.shape == (T, B, INPUT_SIZE)
    for t in range(T):
        assert jnp.allclose(seq_out[t], ref_outs[t], atol=1e-4, rtol=1e-4)
    assert jnp.allclose(h_T, rh, atol=1e-4, rtol=1e-4)
    assert jnp.allclose(c_T, rc, atol=1e-4, rtol=1e-4)

    # --- 3) Fused multi-step decode, bf16 MXU operands (fast path, loose tol) --
    seq_out_b, (h_Tb, c_Tb) = lstm_decode(x_seq, h0[0], c0[0], prepped_bf16)
    jax.block_until_ready((seq_out_b, h_Tb, c_Tb))
    for t in range(T):
        assert jnp.allclose(seq_out_b[t], ref_outs[t], atol=3e-2, rtol=3e-2)
    assert jnp.allclose(h_Tb, rh, atol=3e-2, rtol=3e-2)
    assert jnp.allclose(c_Tb, rc, atol=3e-2, rtol=3e-2)

    print("KERNEL_OK")
</pallas_src>

<mosaic_0001>
module attributes {stable_mosaic.version = 11 : i64} {
  func.func @lstm_decoder_kernel(%arg0: i32, %arg1: memref<1x8x128xf32, #tpu.memory_space<vmem>>, %arg2: memref<8x32xf32, #tpu.memory_space<vmem>>, %arg3: memref<8x32xf32, #tpu.memory_space<vmem>>, %arg4: memref<32x128xf32, #tpu.memory_space<vmem>>, %arg5: memref<32x128xf32, #tpu.memory_space<vmem>>, %arg6: memref<1x128xf32, #tpu.memory_space<vmem>>, %arg7: memref<1x8x128xf32, #tpu.memory_space<vmem>>, %arg8: memref<8x32xf32, #tpu.memory_space<vmem>>, %arg9: memref<8x32xf32, #tpu.memory_space<vmem>>, %arg10: memref<8x32xf32, #tpu.memory_space<vmem>>, %arg11: memref<8x32xf32, #tpu.memory_space<vmem>>, %arg12: memref<1x8x32xf32, #tpu.memory_space<vmem>>) attributes {dimension_semantics = [#tpu.dimension_semantics<arbitrary>], iteration_bounds = array<i64: 1>, scalar_prefetch = 0 : i64, scratch_operands = 3 : i64, tpu.core_type = #tpu.core_type<tc>, window_params = [{transform_indices = @transform_0, window_bounds = array<i64: 1, 8, 128>}, {pipeline_mode = #tpu.pipeline_mode<synchronous>, transform_indices = @transform_1, window_bounds = array<i64: 8, 32>}, {pipeline_mode = #tpu.pipeline_mode<synchronous>, transform_indices = @transform_2, window_bounds = array<i64: 8, 32>}, {pipeline_mode = #tpu.pipeline_mode<synchronous>, transform_indices = @transform_3, window_bounds = array<i64: 32, 128>}, {pipeline_mode = #tpu.pipeline_mode<synchronous>, transform_indices = @transform_4, window_bounds = array<i64: 32, 128>}, {pipeline_mode = #tpu.pipeline_mode<synchronous>, transform_indices = @transform_5, window_bounds = array<i64: 1, 128>}, {transform_indices = @transform_6, window_bounds = array<i64: 1, 8, 128>}, {pipeline_mode = #tpu.pipeline_mode<synchronous>, transform_indices = @transform_7, window_bounds = array<i64: 8, 32>}, {pipeline_mode = #tpu.pipeline_mode<synchronous>, transform_indices = @transform_8, window_bounds = array<i64: 8, 32>}]} {
    %c0_i32 = arith.constant 0 : i32
    %0 = arith.cmpi eq, %arg0, %c0_i32 : i32
    %1 = arith.extui %0 : i1 to i32
    %c0_i32_0 = arith.constant 0 : i32
    %2 = arith.cmpi ne, %1, %c0_i32_0 : i32
    scf.if %2 {
      %c0_29 = arith.constant 0 : index
      %c0_30 = arith.constant 0 : index
      %44 = vector.load %arg2[%c0_29, %c0_30] : memref<8x32xf32, #tpu.memory_space<vmem>>, vector<8x32xf32>
      %c0_31 = arith.constant 0 : index
      %c0_32 = arith.constant 0 : index
      %45 = vector.load %arg10[%c0_31, %c0_32] : memref<8x32xf32, #tpu.memory_space<vmem>>, vector<8x32xf32>
      tpu.vector_store %arg10[%c0_31, %c0_32], %44 {strides = array<i32>} : memref<8x32xf32, #tpu.memory_space<vmem>>, vector<8x32xf32>,
      %c0_33 = arith.constant 0 : index
      %c0_34 = arith.constant 0 : index
      %46 = vector.load %arg3[%c0_33, %c0_34] : memref<8x32xf32, #tpu.memory_space<vmem>>, vector<8x32xf32>
      %c0_35 = arith.constant 0 : index
      %c0_36 = arith.constant 0 : index
      %47 = vector.load %arg11[%c0_35, %c0_36] : memref<8x32xf32, #tpu.memory_space<vmem>>, vector<8x32xf32>
      tpu.vector_store %arg11[%c0_35, %c0_36], %46 {strides = array<i32>} : memref<8x32xf32, #tpu.memory_space<vmem>>, vector<8x32xf32>,
    } else {
    }
    %c0 = arith.constant 0 : index
    %c0_1 = arith.constant 0 : index
    %3 = vector.load %arg10[%c0, %c0_1] : memref<8x32xf32, #tpu.memory_space<vmem>>, vector<8x32xf32>
    %c0_2 = arith.constant 0 : index
    %c0_3 = arith.constant 0 : index
    %4 = vector.load %arg11[%c0_2, %c0_3] : memref<8x32xf32, #tpu.memory_space<vmem>>, vector<8x32xf32>
    %c0_i32_4 = arith.constant 0 : i32
    %5 = arith.index_cast %c0_i32_4 : i32 to index
    %c0_5 = arith.constant 0 : index
    %c0_6 = arith.constant 0 : index
    %6 = vector.load %arg1[%5, %c0_5, %c0_6] : memref<1x8x128xf32, #tpu.memory_space<vmem>>, vector<1x8x128xf32>
    %7 = vector.shape_cast %6 : vector<1x8x128xf32> to vector<8x128xf32>
    %c0_7 = arith.constant 0 : index
    %c0_8 = arith.constant 0 : index
    %8 = vector.load %arg4[%c0_7, %c0_8] : memref<32x128xf32, #tpu.memory_space<vmem>>, vector<32x128xf32>
    %cst = arith.constant dense<0.000000e+00> : vector<8x128xf32>
    %9 = tpu.matmul %3, %8, %cst {dimension_numbers = #tpu.dot_dimension_numbers<[1], [0], [0], [1], [0, 0, 1, 1], [], []>} : vector<8x32xf32>, vector<32x128xf32>, vector<8x128xf32> -> vector<8x128xf32>
    %10 = arith.addf %7, %9 : vector<8x128xf32>
    %11 = arith.negf %10 : vector<8x128xf32>
    %12 = math.exp %11 : vector<8x128xf32>
    %cst_9 = arith.constant 1.000000e+00 : f32
    %13 = vector.broadcast %cst_9 : f32 to vector<8x128xf32>
    %14 = arith.addf %13, %12 : vector<8x128xf32>
    %15 = arith.divf %13, %14 : vector<8x128xf32>
    %16 = vector.extract_strided_slice %15 {offsets = [0, 0], sizes = [8, 32], strides = [1, 1]} : vector<8x128xf32> to vector<8x32xf32>
    %17 = vector.extract_strided_slice %15 {offsets = [0, 32], sizes = [8, 32], strides = [1, 1]} : vector<8x128xf32> to vector<8x32xf32>
    %18 = vector.extract_strided_slice %15 {offsets = [0, 64], sizes = [8, 32], strides = [1, 1]} : vector<8x128xf32> to vector<8x32xf32>
    %19 = vector.extract_strided_slice %10 {offsets = [0, 96], sizes = [8, 32], strides = [1, 1]} : vector<8x128xf32> to vector<8x32xf32>
    %20 = math.tanh %19 : vector<8x32xf32>
    %21 = arith.mulf %17, %4 : vector<8x32xf32>
    %22 = arith.mulf %16, %20 : vector<8x32xf32>
    %23 = arith.addf %21, %22 : vector<8x32xf32>
    %24 = math.tanh %23 : vector<8x32xf32>
    %25 = arith.mulf %18, %24 : vector<8x32xf32>
    %26 = arith.index_cast %c0_i32_4 : i32 to index
    %c0_10 = arith.constant 0 : index
    %c0_11 = arith.constant 0 : index
    %27 = vector.load %arg12[%26, %c0_10, %c0_11] : memref<1x8x32xf32, #tpu.memory_space<vmem>>, vector<1x8x32xf32>
    %28 = vector.shape_cast %27 : vector<1x8x32xf32> to vector<8x32xf32>
    %29 = vector.shape_cast %25 : vector<8x32xf32> to vector<1x8x32xf32>
    tpu.vector_store %arg12[%26, %c0_10, %c0_11], %29 {strides = array<i32>} : memref<1x8x32xf32, #tpu.memory_space<vmem>>, vector<1x8x32xf32>,
    %c1_i32 = arith.constant 1 : i32
    %c0_12 = arith.constant 0 : index
    %c0_13 = arith.constant 0 : index
    %30 = vector.load %arg10[%c0_12, %c0_13] : memref<8x32xf32, #tpu.memory_space<vmem>>, vector<8x32xf32>
    tpu.vector_store %arg10[%c0_12, %c0_13], %25 {strides = array<i32>} : memref<8x32xf32, #tpu.memory_space<vmem>>, vector<8x32xf32>,
    %c0_14 = arith.constant 0 : index
    %c0_15 = arith.constant 0 : index
    %31 = vector.load %arg11[%c0_14, %c0_15] : memref<8x32xf32, #tpu.memory_space<vmem>>, vector<8x32xf32>
    tpu.vector_store %arg11[%c0_14, %c0_15], %23 {strides = array<i32>} : memref<8x32xf32, #tpu.memory_space<vmem>>, vector<8x32xf32>,
    %c0_16 = arith.constant 0 : index
    %c0_17 = arith.constant 0 : index
    %c0_18 = arith.constant 0 : index
    %32 = vector.load %arg12[%c0_16, %c0_17, %c0_18] : memref<1x8x32xf32, #tpu.memory_space<vmem>>, vector<1x8x32xf32>
    %33 = vector.shape_cast %32 : vector<1x8x32xf32> to vector<8x32xf32>
    %c0_19 = arith.constant 0 : index
    %c0_20 = arith.constant 0 : index
    %34 = vector.load %arg5[%c0_19, %c0_20] : memref<32x128xf32, #tpu.memory_space<vmem>>, vector<32x128xf32>
    %cst_21 = arith.constant dense<0.000000e+00> : vector<8x128xf32>
    %35 = tpu.matmul %33, %34, %cst_21 {dimension_numbers = #tpu.dot_dimension_numbers<[1], [0], [0], [1], [0, 0, 1, 1], [], []>} : vector<8x32xf32>, vector<32x128xf32>, vector<8x128xf32> -> vector<8x128xf32>
    %c0_22 = arith.constant 0 : index
    %c0_23 = arith.constant 0 : index
    %36 = vector.load %arg6[%c0_22, %c0_23] : memref<1x128xf32, #tpu.memory_space<vmem>>, vector<1x128xf32>
    %37 = vector.broadcast %36 : vector<1x128xf32> to vector<8x128xf32>
    %38 = arith.addf %35, %37 : vector<8x128xf32>
    %39 = vector.shape_cast %38 : vector<8x128xf32> to vector<1x8x128xf32>
    %c0_24 = arith.constant 0 : index
    %c0_25 = arith.constant 0 : index
    %c0_26 = arith.constant 0 : index
    %40 = vector.load %arg7[%c0_24, %c0_25, %c0_26] : memref<1x8x128xf32, #tpu.memory_space<vmem>>, vector<1x8x128xf32>
    tpu.vector_store %arg7[%c0_24, %c0_25, %c0_26], %39 {strides = array<i32>} : memref<1x8x128xf32, #tpu.memory_space<vmem>>, vector<1x8x128xf32>,
    %c0_i32_27 = arith.constant 0 : i32
    %41 = arith.cmpi eq, %arg0, %c0_i32_27 : i32
    %42 = arith.extui %41 : i1 to i32
    %c0_i32_28 = arith.constant 0 : i32
    %43 = arith.cmpi ne, %42, %c0_i32_28 : i32
    scf.if %43 {
      %c0_29 = arith.constant 0 : index
      %c0_30 = arith.constant 0 : index
      %44 = vector.load %arg8[%c0_29, %c0_30] : memref<8x32xf32, #tpu.memory_space<vmem>>, vector<8x32xf32>
      tpu.vector_store %arg8[%c0_29, %c0_30], %25 {strides = array<i32>} : memref<8x32xf32, #tpu.memory_space<vmem>>, vector<8x32xf32>,
      %c0_31 = arith.constant 0 : index
      %c0_32 = arith.constant 0 : index
      %45 = vector.load %arg9[%c0_31, %c0_32] : memref<8x32xf32, #tpu.memory_space<vmem>>, vector<8x32xf32>
      tpu.vector_store %arg9[%c0_31, %c0_32], %23 {strides = array<i32>} : memref<8x32xf32, #tpu.memory_space<vmem>>, vector<8x32xf32>,
    } else {
    }
    return
  }
  func.func @transform_0(%arg0: i32) -> (i32, i32, i32) {
    %c0_i32 = arith.constant 0 : i32
    %c0_i32_0 = arith.constant 0 : i32
    %c0_i32_1 = arith.constant 0 : i32
    return %arg0, %c0_i32, %c0_i32_0 : i32, i32, i32
  }
  func.func @transform_1(%arg0: i32) -> (i32, i32) {
    %c0_i32 = arith.constant 0 : i32
    %c0_i32_0 = arith.constant 0 : i32
    %c0_i32_1 = arith.constant 0 : i32
    return %c0_i32, %c0_i32_0 : i32, i32
  }
  func.func @transform_2(%arg0: i32) -> (i32, i32) {
    %c0_i32 = arith.constant 0 : i32
    %c0_i32_0 = arith.constant 0 : i32
    %c0_i32_1 = arith.constant 0 : i32
    return %c0_i32, %c0_i32_0 : i32, i32
  }
  func.func @transform_3(%arg0: i32) -> (i32, i32) {
    %c0_i32 = arith.constant 0 : i32
    %c0_i32_0 = arith.constant 0 : i32
    %c0_i32_1 = arith.constant 0 : i32
    return %c0_i32, %c0_i32_0 : i32, i32
  }
  func.func @transform_4(%arg0: i32) -> (i32, i32) {
    %c0_i32 = arith.constant 0 : i32
    %c0_i32_0 = arith.constant 0 : i32
    %c0_i32_1 = arith.constant 0 : i32
    return %c0_i32, %c0_i32_0 : i32, i32
  }
  func.func @transform_5(%arg0: i32) -> (i32, i32) {
    %c0_i32 = arith.constant 0 : i32
    %c0_i32_0 = arith.constant 0 : i32
    %c0_i32_1 = arith.constant 0 : i32
    return %c0_i32, %c0_i32_0 : i32, i32
  }
  func.func @transform_6(%arg0: i32) -> (i32, i32, i32) {
    %c0_i32 = arith.constant 0 : i32
    %c0_i32_0 = arith.constant 0 : i32
    %c0_i32_1 = arith.constant 0 : i32
    return %arg0, %c0_i32, %c0_i32_0 : i32, i32, i32
  }
  func.func @transform_7(%arg0: i32) -> (i32, i32) {
    %c0_i32 = arith.constant 0 : i32
    %c0_i32_0 = arith.constant 0 : i32
    %c0_i32_1 = arith.constant 0 : i32
    return %c0_i32, %c0_i32_0 : i32, i32
  }
  func.func @transform_8(%arg0: i32) -> (i32, i32) {
    %c0_i32 = arith.constant 0 : i32
    %c0_i32_0 = arith.constant 0 : i32
    %c0_i32_1 = arith.constant 0 : i32
    return %c0_i32, %c0_i32_0 : i32, i32
  }
}

</mosaic_0001>

<llo_original>
// kernel: lstm_decode.1
$region0: #{lstm_decode.1}
  #allocation0 [shape = 'u32[]', space=smem, size = 0x4, offset = 0x4, fixed_abs, tag = 'smem constant byte address 0x4 - core index']
  #allocation1 [shape = 'u32[72,128]{1,0:T(1,128)}', space=vmem, size = 0x9000, scoped, tag = 'internal scratch']
  #allocation2 [shape = 'f32[8,32]{1,0:T(8,128)}', space=vmem, size = 0x1000, scoped, tag = 'scratch operand']
  #allocation3 [shape = 'f32[8,32]{1,0:T(8,128)}', space=vmem, size = 0x1000, scoped, tag = 'scratch operand']
  #allocation4 [shape = 'f32[1,8,32]{2,1,0:T(8,128)}', space=vmem, size = 0x1000, scoped, tag = 'scratch operand']
  %s0 = inlined_call_operand.vmem [shape: f32[1,8,128], index: 0, kind: input, shape index: {}]
  %s1 = inlined_call_operand.vmem [shape: f32[8,32], index: 1, kind: input, shape index: {}]
  %s2 = inlined_call_operand.vmem [shape: f32[8,32], index: 2, kind: input, shape index: {}]
  %s3 = inlined_call_operand.hbm [shape: f32[32,128], index: 3, kind: input, shape index: {}]
  %s4 = inlined_call_operand.hbm [shape: f32[32,128], index: 4, kind: input, shape index: {}]
  %s5 = inlined_call_operand.vmem [shape: f32[1,128], index: 5, kind: input, shape index: {}]
  %s6 = inlined_call_operand.vmem [shape: f32[1,8,128], index: 6, kind: output, shape index: {0}]
  %s7 = inlined_call_operand.vmem [shape: f32[8,32], index: 7, kind: output, shape index: {1}]
  %s8 = inlined_call_operand.vmem [shape: f32[8,32], index: 8, kind: output, shape index: {2}]
  %9 = xla_tuple %s6, %s7, %s8
  %s10 = sld [smem:[#allocation0]]
  $region66: #{lstm_decode.1} parent=0
    _
  %s12 = ssub.s32 1, %s10
  %s13 = scalar_select 0, %s12, %s10
  $region1: #{lstm_decode.1} parent=0
    #allocation5 [shape = 'u8[16384]{0}', space=vmem, size = 0x4000, scoped, tag = 'input window, operand 3, single buffered']
    #allocation6 [shape = 's32[1]{0}', space=sflag, size = 0x4, scoped, tag = 'scoped memory for lstm_decode.1']
    #allocation7 [shape = 'u8[16384]{0}', space=vmem, size = 0x4000, scoped, tag = 'input window, operand 4, single buffered']
    #allocation8 [shape = 's32[1]{0}', space=sflag, size = 0x4, scoped, tag = 'scoped memory for lstm_decode.1']
    %14 = vsyncpa [#allocation6], 0
    %15 = vsyncpa [#allocation8], 0
    // Predicated region
    $region2: #{lstm_decode.1} parent=1 // pred_check
      _
    $region3: #{lstm_decode.1} parent=1 // pred_check_branch
      %17 = sbr.rel (0) target = $region5
    $region4: #{lstm_decode.1} parent=1 // pred_region
      _
    $region5: #{lstm_decode.1} parent=1 // pred_fallthru
      _
    // Predicated region
    $region6: #{lstm_decode.1} parent=1 // pred_check
      _
    $region7: #{lstm_decode.1} parent=1 // pred_check_branch
      %19 = sbr.rel (0) target = $region9
    $region8: #{lstm_decode.1} parent=1 // pred_region
      _
    $region9: #{lstm_decode.1} parent=1 // pred_fallthru
      _
    // Predicated region
    $region10: #{lstm_decode.1} parent=1 // pred_check
      _
    $region11: #{lstm_decode.1} parent=1 // pred_check_branch
      %21 = sbr.rel (0) target = $region13
    $region12: #{lstm_decode.1} parent=1 // pred_region
      _
    $region13: #{lstm_decode.1} parent=1 // pred_fallthru
      _
    // Predicated region
    $region14: #{lstm_decode.1} parent=1 // pred_check
      _
    $region15: #{lstm_decode.1} parent=1 // pred_check_branch
      %23 = sbr.rel (0) target = $region17
    $region16: #{lstm_decode.1} parent=1 // pred_region
      %25 = vsyncadd [#allocation6], 0
      %s26 = sshll.u32 %s3, 4
      %s27 = int_to_ptr.hbm [resolvable:$true] %s26
      %s28 = sshll.u32 [#allocation5], 4
      %s29 = int_to_ptr.vmem [resolvable:$true] %s28
      %34 = dma.hbm_to_vmem [thread:$0]  %s27, 512, %s29, [#allocation6], 128, 128, 8
    $region17: #{lstm_decode.1} parent=1 // pred_fallthru
      _
    // Predicated region
    $region18: #{lstm_decode.1} parent=1 // pred_check
      _
    $region19: #{lstm_decode.1} parent=1 // pred_check_branch
      %36 = sbr.rel (0) target = $region21
    $region20: #{lstm_decode.1} parent=1 // pred_region
      %38 = vsyncadd [#allocation8], 0
      %s39 = sshll.u32 %s4, 4
      %s40 = int_to_ptr.hbm [resolvable:$true] %s39
      %s41 = sshll.u32 [#allocation7], 4
      %s42 = int_to_ptr.vmem [resolvable:$true] %s41
      %47 = dma.hbm_to_vmem [thread:$0]  %s40, 512, %s42, [#allocation8], 128, 128, 8
    $region21: #{lstm_decode.1} parent=1 // pred_fallthru
      _
    // Predicated region
    $region22: #{lstm_decode.1} parent=1 // pred_check
      _
    $region23: #{lstm_decode.1} parent=1 // pred_check_branch
      %49 = sbr.rel (0) target = $region25
    $region24: #{lstm_decode.1} parent=1 // pred_region
      _
    $region25: #{lstm_decode.1} parent=1 // pred_fallthru
      _
    // Predicated region
    $region26: #{lstm_decode.1} parent=1 // pred_check
      _
    $region27: #{lstm_decode.1} parent=1 // pred_check_branch
      %51 = sbr.rel (0) target = $region29
    $region28: #{lstm_decode.1} parent=1 // pred_region
      %53 = dma.done [#allocation6], 512
    $region29: #{lstm_decode.1} parent=1 // pred_fallthru
      _
    // Predicated region
    $region30: #{lstm_decode.1} parent=1 // pred_check
      _
    $region31: #{lstm_decode.1} parent=1 // pred_check_branch
      %55 = sbr.rel (0) target = $region33
    $region32: #{lstm_decode.1} parent=1 // pred_region
      %57 = dma.done [#allocation8], 512
    $region33: #{lstm_decode.1} parent=1 // pred_fallthru
      _
    %p58 = scmp.eq.s32.totalorder 0, 0
    // Predicated region
    $region34: #{lstm_decode.1} parent=1 // pred_check
      %p59 = pneg %p58
    $region35: #{lstm_decode.1} parent=1 // pred_check_branch
      %61 = sbr.rel (%p59) target = $region37
    $region36: #{lstm_decode.1} parent=1 // pred_region
      %v62 = vld [vmem:[%s1] sm:$0xff]
      %vm63 = vcmask 261120
      %64 = vst.msk [vmem:[#allocation2] sm:$0xff] %vm63, %v62
      %v65 = vld [vmem:[%s2] sm:$0xff]
      %66 = vst.msk [vmem:[#allocation3] sm:$0xff] %vm63, %v65
    $region37: #{lstm_decode.1} parent=1 // pred_fallthru
      _
    %v67 = vld [vmem:[#allocation2] sm:$0xff]
    %v68 = vld [vmem:[#allocation3] sm:$0xff]
    %v69 = vld [vmem:[%s0] sm:$0xff]
    %v70 = vld [vmem:[#allocation5] sm:$0xff]
    %v71 = vld [vmem:[#allocation5 + $0x8] sm:$0xff]
    %v72 = vld [vmem:[#allocation5 + $0x10] sm:$0xff]
    %v73 = vld [vmem:[#allocation5 + $0x18] sm:$0xff]
    %vm74 = vcmask 261120
    %v76 = vsel %vm74, %v67, 0
    %78 = vmatpush.msra.mxu0 0.0
    %79 = vmatpush.msra.mxu0 0.0
    %80 = vmatpush.msra.mxu0 0.0
    %81 = vmatpush.msra.mxu0 0.0
    %82 = vmatpush.msra.mxu0 0.0
    %83 = vmatpush.msra.mxu0 0.0
    %84 = vmatpush.msra.mxu0 0.0
    %85 = vmatpush.msra.mxu0 0.0
    %86 = vmatpush.msra.mxu0 0.0
    %87 = vmatpush.msra.mxu0 0.0
    %88 = vmatpush.msra.mxu0 0.0
    %89 = vmatpush.msra.mxu0 0.0
    %90 = vmatpush.msra.mxu0 %v73
    %91 = vmatpush.msra.mxu0 %v72
    %92 = vmatpush.msra.mxu0 %v71
    %93 = vmatpush.msra.mxu0 %v70
    %94 = vmatmul.f32.gmra.mxu0 %v76
    %v95 = vpop.f32.mrf.mxu0
    %v96 = vadd.f32 0.0, %v95
    %97 = vdwg.mxu0
    %v98 = vadd.f32 %v69, %v96
    %v99 = vxor.u32 %v98, 2147483648
    %v100 = vmul.f32 %v99, 1.442695
    %v101 = vpow.pop %v100
    %v102 = vadd.f32 %v101, 1.0
    %v103 = vrcp.pop %v102
    %v104 = vmul.f32 %v102, %v103
    %v105 = vsub.f32 1.0, %v104
    %v106 = vmul.f32 %v103, %v105
    %v107 = vadd.f32 %v103, %v106
    %vm108 = vweird.f32 %v102
    %vm109 = vweird.f32 %v103
    %vm110 = vmor %vm108, %vm109
    %v111 = vsel %vm110, %v103, %v107
    %v112 = vand.u32 2147483647, %v102
    %vm113 = vcmp.eq.f32.partialorder %v112, 8.507059e+37
    %v114 = vand.u32 %v102, 2147483648
    %v115 = vor.u32 1.1754944e-38, %v114
    %v116 = vsel %vm113, %v115, %v111
    %v117 = vmul.f32 1.0, %v116
    %v118 = vtanh.pop %v98
    %120 = vrot.lane.b32.xlu0 %v68, 32
    %v121 = vpop.permute.xlu0 %120
    %v123 = vmul.f32 %v117, %v121
    %125 = vrot.lane.b32.xlu0 %v118, 32
    %v126 = vpop.permute.xlu0 %125
    %v128 = vmul.f32 %v117, %v126
    %130 = vrot.lane.b32.xlu0 %v128, 32
    %v131 = vpop.permute.xlu0 %130
    %v133 = vadd.f32 %v123, %v131
    %v134 = vtanh.pop %v133
    %136 = vrot.lane.b32.xlu0 %v134, 32
    %v137 = vpop.permute.xlu0 %136
    %v139 = vmul.f32 %v117, %v137
    %141 = vrot.lane.b32.xlu0 %v139, 64
    %v142 = vpop.permute.xlu0 %141
    %144 = vst.msk [vmem:[#allocation4] sm:$0xff] %vm74, %v142
    %145 = vst.msk [vmem:[#allocation2] sm:$0xff] %vm74, %v142
    %147 = vrot.lane.b32.xlu0 %v133, 96
    %v148 = vpop.permute.xlu0 %147
    %150 = vst.msk [vmem:[#allocation3] sm:$0xff] %vm74, %v148
    %v151 = vld [vmem:[#allocation4] sm:$0xff]
    %v152 = vld [vmem:[#allocation7] sm:$0xff]
    %v153 = vld [vmem:[#allocation7 + $0x8] sm:$0xff]
    %v154 = vld [vmem:[#allocation7 + $0x10] sm:$0xff]
    %v155 = vld [vmem:[#allocation7 + $0x18] sm:$0xff]
    %v156 = vld [vmem:[%s5] sm:$0x1]
    %v158 = vperm.slane %v156, 0
    %v161 = vsel %vm74, %v151, 0
    %163 = vmatpush.msra.mxu0 0.0
    %164 = vmatpush.msra.mxu0 0.0
    %165 = vmatpush.msra.mxu0 0.0
    %166 = vmatpush.msra.mxu0 0.0
    %167 = vmatpush.msra.mxu0 0.0
    %168 = vmatpush.msra.mxu0 0.0
    %169 = vmatpush.msra.mxu0 0.0
    %170 = vmatpush.msra.mxu0 0.0
    %171 = vmatpush.msra.mxu0 0.0
    %172 = vmatpush.msra.mxu0 0.0
    %173 = vmatpush.msra.mxu0 0.0
    %174 = vmatpush.msra.mxu0 0.0
    %175 = vmatpush.msra.mxu0 %v155
    %176 = vmatpush.msra.mxu0 %v154
    %177 = vmatpush.msra.mxu0 %v153
    %178 = vmatpush.msra.mxu0 %v152
    %179 = vmatmul.f32.gmra.mxu0 %v161
    %v180 = vpop.f32.mrf.mxu0
    %v181 = vadd.f32 %v158, %v180
    %182 = vdwg.mxu0
    %183 = vst [vmem:[%s6] sm:$0xff] %v181
    // Predicated region
    $region38: #{lstm_decode.1} parent=1 // pred_check
      %p184 = pneg %p58
    $region39: #{lstm_decode.1} parent=1 // pred_check_branch
      %186 = sbr.rel (%p184) target = $region41
    $region40: #{lstm_decode.1} parent=1 // pred_region
      %187 = vst.msk [vmem:[%s7] sm:$0xff] %vm74, %v142
      %188 = vst.msk [vmem:[%s8] sm:$0xff] %vm74, %v148
    $region41: #{lstm_decode.1} parent=1 // pred_fallthru
      _
    // Predicated region
    $region42: #{lstm_decode.1} parent=1 // pred_check
      _
    $region43: #{lstm_decode.1} parent=1 // pred_check_branch
      %190 = sbr.rel (0) target = $region45
    $region44: #{lstm_decode.1} parent=1 // pred_region
      _
    $region45: #{lstm_decode.1} parent=1 // pred_fallthru
      _
    // Predicated region
    $region46: #{lstm_decode.1} parent=1 // pred_check
      _
    $region47: #{lstm_decode.1} parent=1 // pred_check_branch
      %192 = sbr.rel (0) target = $region49
    $region48: #{lstm_decode.1} parent=1 // pred_region
      _
    $region49: #{lstm_decode.1} parent=1 // pred_fallthru
      _
    // Predicated region
    $region50: #{lstm_decode.1} parent=1 // pred_check
      _
    $region51: #{lstm_decode.1} parent=1 // pred_check_branch
      %194 = sbr.rel (0) target = $region53
    $region52: #{lstm_decode.1} parent=1 // pred_region
      _
    $region53: #{lstm_decode.1} parent=1 // pred_fallthru
      _
    // Predicated region
    $region54: #{lstm_decode.1} parent=1 // pred_check
      _
    $region55: #{lstm_decode.1} parent=1 // pred_check_branch
      %196 = sbr.rel (0) target = $region57
    $region56: #{lstm_decode.1} parent=1 // pred_region
      _
    $region57: #{lstm_decode.1} parent=1 // pred_fallthru
      _
    // Predicated region
    $region58: #{lstm_decode.1} parent=1 // pred_check
      _
    $region59: #{lstm_decode.1} parent=1 // pred_check_branch
      %198 = sbr.rel (0) target = $region61
    $region60: #{lstm_decode.1} parent=1 // pred_region
      _
    $region61: #{lstm_decode.1} parent=1 // pred_fallthru
      _
    // Predicated region
    $region62: #{lstm_decode.1} parent=1 // pred_check
      _
    $region63: #{lstm_decode.1} parent=1 // pred_check_branch
      %200 = sbr.rel (0) target = $region65
    $region64: #{lstm_decode.1} parent=1 // pred_region
      _
    $region65: #{lstm_decode.1} parent=1 // pred_fallthru
      _
    %201 = vsyncpa [#allocation6], 1
    %202 = vsyncpa [#allocation8], 1

</llo_original>
